<compile_context>
chip_gen: v7x
topology: tpu7x:2x2x1
jax: 0.10.0
libtpu: 0.0.40
codegen_flags: <defaults>
</compile_context>

<pallas_src>
import jax
import jax.numpy as jnp
from jax.experimental import pallas as pl
from jax.experimental.pallas import tpu as pltpu

_N_PAD = 128  # lane-dense output width (true logits width is 2)

# Flipped to False (once) if this jax/libtpu build rejects pl.Buffered(1) on the
# constant weight/bias blocks; everything still runs with default double-buffering.
_BUFFERED_CONSTS_OK = True


def _fc_cls_kernel(x_ref, w_ref, b_ref, o_ref):
    # x_ref: (TB, H)     -- [CLS] embeddings for this batch tile (only these rows DMA'd)
    # w_ref: (H, 128)    -- weight.T zero-padded 2 -> 128 output columns (lane dense)
    # b_ref: (1, 128)    -- f32 bias zero-padded to 128 lanes (constant block)
    # o_ref: (TB, 128)   -- lane-dense logits; columns >= 2 hold exact zeros
    acc = jnp.dot(x_ref[...], w_ref[...], preferred_element_type=jnp.float32)
    o_ref[...] = (acc + b_ref[...]).astype(o_ref.dtype)  # bias add is a free VPU op


def _pick_batch_tile(B, H, in_itemsize, out_itemsize, *, max_tb=2048,
                     vmem_budget_bytes=24 << 20, min_steps=2):
    """Largest batch tile that (a) fits the VMEM budget with double-buffered streams,
    (b) is sublane-aligned (8 rows f32 / 16 rows bf16), and (c) leaves >= min_steps
    grid steps so v7x can shard the 'parallel' axis across its two TensorCores."""
    sub = 16 if in_itemsize < 4 else 8
    if B <= sub:
        return B  # single full-extent block (always a legal block shape)
    # Conservatively assume double-buffered constants when budgeting.
    fixed = 2 * (H * _N_PAD * in_itemsize + _N_PAD * 4)
    per_row = 2 * H * in_itemsize + 2 * _N_PAD * out_itemsize
    cap = max(sub, (vmem_budget_bytes - fixed) // per_row)
    want = max(sub, (B + min_steps - 1) // min_steps)
    tb = min(int(cap), int(max_tb), int(want))
    return max(sub, (tb // sub) * sub)


def _build_fc_call(B_pad, TB, H, in_dtype, out_dtype, single_buffer_consts):
    const_kw = {"pipeline_mode": pl.Buffered(1)} if single_buffer_consts else {}
    in_item = jnp.dtype(in_dtype).itemsize
    out_item = jnp.dtype(out_dtype).itemsize
    cost = pl.CostEstimate(
        flops=2 * B_pad * H * _N_PAD,
        transcendentals=0,
        bytes_accessed=(B_pad * H * in_item          # CLS activations
                        + H * _N_PAD * in_item       # padded weight (read once)
                        + _N_PAD * 4                 # padded bias
                        + B_pad * _N_PAD * out_item  # lane-dense output
                        ),
    )
    return pl.pallas_call(
        _fc_cls_kernel,
        out_shape=jax.ShapeDtypeStruct((B_pad, _N_PAD), out_dtype),
        grid_spec=pltpu.PrefetchScalarGridSpec(
            num_scalar_prefetch=0,
            grid=(B_pad // TB,),  # batch tiled -> software-pipelined DMA across tiles
            in_specs=[
                pl.BlockSpec((TB, H), lambda i: (i, 0)),                   # CLS rows of this tile
                pl.BlockSpec((H, _N_PAD), lambda i: (0, 0), **const_kw),   # weight, constant block
                pl.BlockSpec((1, _N_PAD), lambda i: (0, 0), **const_kw),   # bias, constant block
            ],
            out_specs=pl.BlockSpec((TB, _N_PAD), lambda i: (i, 0)),        # lane-dense store
        ),
        compiler_params=pltpu.CompilerParams(
            # batch tiles are independent -> shard across both TensorCores on v7x
            dimension_semantics=("parallel",),
            # v5e's scoped-VMEM default is 16 MiB; large tiles need this raised explicitly.
            vmem_limit_bytes=32 << 20,
        ),
        cost_estimate=cost,
    )


def prepare_nsp_params(weight, bias, compute_dtype=jnp.float32):
    """Build the lane-dense padded weight/bias ONCE at parameter-load time.

    weight: (2, hidden) PyTorch nn.Linear layout; bias: (2,).
    Returns w_pad (hidden, 128) in compute_dtype, b_pad (1, 128) f32.
    """
    H = weight.shape[1]
    w_pad = jnp.zeros((H, _N_PAD), compute_dtype).at[:, :2].set(
        weight.T.astype(compute_dtype))
    b_pad = jnp.zeros((1, _N_PAD), jnp.float32).at[0, :2].set(
        bias.astype(jnp.float32))
    return w_pad, b_pad


def fc_layer(x, w_pad, b_pad, *, tb=None, out_dtype=jnp.float32):
    """NSP head: Linear(hidden, 2) applied to the [CLS] token.

    x:     (B, S, H) encoder activations (f32 or bf16)
    w_pad: (H, 128) padded weight from prepare_nsp_params (same dtype as x preferred)
    b_pad: (1, 128) padded f32 bias from prepare_nsp_params
    Returns (B, 2) logits in out_dtype.
    """
    global _BUFFERED_CONSTS_OK
    B, S, H = x.shape
    assert w_pad.shape == (H, _N_PAD) and b_pad.shape == (1, _N_PAD)

    in_item = jnp.dtype(x.dtype).itemsize
    out_item = jnp.dtype(out_dtype).itemsize
    sub = 16 if in_item < 4 else 8

    TB = int(tb) if tb is not None else _pick_batch_tile(B, H, in_item, out_item)
    grid_n = (B + TB - 1) // TB
    assert grid_n == 1 or TB % sub == 0, "batch tile must be sublane-aligned"
    B_pad = grid_n * TB

    aligned_view = (H % 128 == 0) or (S == 1)
    if aligned_view and B_pad == B:
        # Zero-copy CLS view: row-major (B, S, H) -> (B, S*H); the first H lanes of each
        # row are exactly x[b, 0, :], so a (TB, H) block at column-block 0 DMAs only the
        # CLS embeddings (HBM traffic and VMEM footprint drop by a factor of S).
        x_src = x.reshape(B, S * H)
    else:
        # Awkward batch size or unaligned hidden: gather the CLS rows (small (B, H) copy)
        # and zero-pad the batch so every tile is full — keeps >=2 pipelined grid steps
        # and v7x dual-core sharding instead of a single unpipelined block.
        x_src = x[:, 0, :]
        if B_pad != B:
            x_src = jnp.pad(x_src, ((0, B_pad - B), (0, 0)))

    out_pad = None
    if _BUFFERED_CONSTS_OK:
        try:
            call = _build_fc_call(B_pad, TB, H, x.dtype, out_dtype, True)
            out_pad = call(x_src, w_pad, b_pad)
        except Exception:
            _BUFFERED_CONSTS_OK = False  # fall back to default double-buffered constants
    if out_pad is None:
        call = _build_fc_call(B_pad, TB, H, x.dtype, out_dtype, False)
        out_pad = call(x_src, w_pad, b_pad)

    # Padded rows (zeros) and padded columns (>=2) are discarded here; downstream code
    # that tolerates a (B, 128) lane-dense output could skip this slice entirely.
    return out_pad[:B, :2]


def init_params(hidden, key):
    """Deterministic init matching nn.Linear(hidden, 2) + xavier_normal_ weight."""
    kw, kb = jax.random.split(key)
    std = (2.0 / (hidden + 2)) ** 0.5                      # xavier_normal_, gain=1
    weight = std * jax.random.normal(kw, (2, hidden), dtype=jnp.float32)
    bound = 1.0 / (hidden ** 0.5)                          # PyTorch default bias init
    bias = jax.random.uniform(kb, (2,), dtype=jnp.float32, minval=-bound, maxval=bound)
    return weight, bias


if __name__ == "__main__":
    key = jax.random.PRNGKey(0)
    kx1, kx2, kx3, kp1, kp2, kp3 = jax.random.split(key, 6)

    # Case 1: lane-aligned hidden (BERT-like), auto tile -> 2 pipelined parallel steps,
    # zero-copy CLS view, bias added in-kernel.
    B1, S1, H1 = 16, 8, 128
    x1 = jax.random.normal(kx1, (B1, S1, H1), dtype=jnp.float32)
    w1, b1 = init_params(H1, kp1)
    w1p, b1p = prepare_nsp_params(w1, b1)                   # hoisted out of the call path
    out1 = jax.block_until_ready(fc_layer(x1, w1p, b1p))
    ref1 = x1[:, 0] @ w1.T + b1
    assert out1.shape == (B1, 2)
    assert jnp.allclose(out1, ref1, atol=1e-4, rtol=1e-4)

    # Case 2: awkward batch (B=10, like the PyTorch batches of 10) + unaligned hidden ->
    # CLS gather + padded tail tile, still 2 pipelined grid steps.
    B2, S2, H2 = 10, 8, 32
    x2 = jax.random.normal(kx2, (B2, S2, H2), dtype=jnp.float32)
    w2, b2 = init_params(H2, kp2)
    w2p, b2p = prepare_nsp_params(w2, b2)
    out2 = jax.block_until_ready(fc_layer(x2, w2p, b2p))
    ref2 = x2[:, 0] @ w2.T + b2
    assert out2.shape == (B2, 2)
    assert jnp.allclose(out2, ref2, atol=1e-4, rtol=1e-4)

    # Case 3: bf16 activations/weights and bf16 output (halves DMA + writeback traffic),
    # f32 MXU accumulation, 16-row sublane-aligned tiles.
    B3, S3, H3 = 32, 4, 128
    x3 = jax.random.normal(kx3, (B3, S3, H3), dtype=jnp.float32).astype(jnp.bfloat16)
    w3, b3 = init_params(H3, kp3)
    w3p, b3p = prepare_nsp_params(w3, b3, compute_dtype=jnp.bfloat16)
    out3 = jax.block_until_ready(fc_layer(x3, w3p, b3p, out_dtype=jnp.bfloat16))
    ref3 = x3[:, 0].astype(jnp.float32) @ w3p[:, :2].astype(jnp.float32) + b3
    assert out3.shape == (B3, 2)
    assert jnp.allclose(out3.astype(jnp.float32), ref3, atol=3e-2, rtol=3e-2)

    print("KERNEL_OK")
</pallas_src>

<mosaic_0001>
module attributes {stable_mosaic.version = 11 : i64} {
  func.func @_fc_cls_kernel(%arg0: i32, %arg1: memref<8x128xf32, #tpu.memory_space<vmem>>, %arg2: memref<128x128xf32, #tpu.memory_space<vmem>>, %arg3: memref<1x128xf32, #tpu.memory_space<vmem>>, %arg4: memref<8x128xf32, #tpu.memory_space<vmem>>) attributes {dimension_semantics = [#tpu.dimension_semantics<parallel>], iteration_bounds = array<i64: 2>, scalar_prefetch = 0 : i64, scratch_operands = 0 : i64, tpu.core_type = #tpu.core_type<tc>, window_params = [{transform_indices = @transform_0, window_bounds = array<i64: 8, 128>}, {pipeline_mode = #tpu.pipeline_mode<synchronous>, transform_indices = @transform_1, window_bounds = array<i64: 128, 128>}, {pipeline_mode = #tpu.pipeline_mode<synchronous>, transform_indices = @transform_2, window_bounds = array<i64: 1, 128>}, {transform_indices = @transform_3, window_bounds = array<i64: 8, 128>}]} {
    %c0 = arith.constant 0 : index
    %c0_0 = arith.constant 0 : index
    %0 = vector.load %arg1[%c0, %c0_0] : memref<8x128xf32, #tpu.memory_space<vmem>>, vector<8x128xf32>
    %c0_1 = arith.constant 0 : index
    %c0_2 = arith.constant 0 : index
    %1 = vector.load %arg2[%c0_1, %c0_2] : memref<128x128xf32, #tpu.memory_space<vmem>>, vector<128x128xf32>
    %cst = arith.constant dense<0.000000e+00> : vector<8x128xf32>
    %2 = tpu.matmul %0, %1, %cst {dimension_numbers = #tpu.dot_dimension_numbers<[1], [0], [0], [1], [0, 0, 1, 1], [], []>} : vector<8x128xf32>, vector<128x128xf32>, vector<8x128xf32> -> vector<8x128xf32>
    %c0_3 = arith.constant 0 : index
    %c0_4 = arith.constant 0 : index
    %3 = vector.load %arg3[%c0_3, %c0_4] : memref<1x128xf32, #tpu.memory_space<vmem>>, vector<1x128xf32>
    %4 = vector.broadcast %3 : vector<1x128xf32> to vector<8x128xf32>
    %5 = arith.addf %2, %4 : vector<8x128xf32>
    %c0_5 = arith.constant 0 : index
    %c0_6 = arith.constant 0 : index
    %6 = vector.load %arg4[%c0_5, %c0_6] : memref<8x128xf32, #tpu.memory_space<vmem>>, vector<8x128xf32>
    tpu.vector_store %arg4[%c0_5, %c0_6], %5 {strides = array<i32>} : memref<8x128xf32, #tpu.memory_space<vmem>>, vector<8x128xf32>,
    return
  }
  func.func @transform_0(%arg0: i32) -> (i32, i32) {
    %c0_i32 = arith.constant 0 : i32
    %c0_i32_0 = arith.constant 0 : i32
    return %arg0, %c0_i32 : i32, i32
  }
  func.func @transform_1(%arg0: i32) -> (i32, i32) {
    %c0_i32 = arith.constant 0 : i32
    %c0_i32_0 = arith.constant 0 : i32
    %c0_i32_1 = arith.constant 0 : i32
    return %c0_i32, %c0_i32_0 : i32, i32
  }
  func.func @transform_2(%arg0: i32) -> (i32, i32) {
    %c0_i32 = arith.constant 0 : i32
    %c0_i32_0 = arith.constant 0 : i32
    %c0_i32_1 = arith.constant 0 : i32
    return %c0_i32, %c0_i32_0 : i32, i32
  }
  func.func @transform_3(%arg0: i32) -> (i32, i32) {
    %c0_i32 = arith.constant 0 : i32
    %c0_i32_0 = arith.constant 0 : i32
    return %arg0, %c0_i32 : i32, i32
  }
}

module attributes {stable_mosaic.version = 11 : i64} {
  func.func @_fc_cls_kernel(%arg0: i32, %arg1: memref<8x128xf32, #tpu.memory_space<vmem>>, %arg2: memref<128x128xf32, #tpu.memory_space<vmem>>, %arg3: memref<1x128xf32, #tpu.memory_space<vmem>>, %arg4: memref<8x128xf32, #tpu.memory_space<vmem>>) attributes {dimension_semantics = [#tpu.dimension_semantics<parallel>], iteration_bounds = array<i64: 2>, scalar_prefetch = 0 : i64, scratch_operands = 0 : i64, tpu.core_type = #tpu.core_type<tc>, window_params = [{transform_indices = @transform_0, window_bounds = array<i64: 8, 128>}, {pipeline_mode = #tpu.pipeline_mode<synchronous>, transform_indices = @transform_1, window_bounds = array<i64: 128, 128>}, {pipeline_mode = #tpu.pipeline_mode<synchronous>, transform_indices = @transform_2, window_bounds = array<i64: 1, 128>}, {transform_indices = @transform_3, window_bounds = array<i64: 8, 128>}]} {
    %c0 = arith.constant 0 : index
    %c0_0 = arith.constant 0 : index
    %0 = vector.load %arg1[%c0, %c0_0] : memref<8x128xf32, #tpu.memory_space<vmem>>, vector<8x128xf32>
    %c0_1 = arith.constant 0 : index
    %c0_2 = arith.constant 0 : index
    %1 = vector.load %arg2[%c0_1, %c0_2] : memref<128x128xf32, #tpu.memory_space<vmem>>, vector<128x128xf32>
    %cst = arith.constant dense<0.000000e+00> : vector<8x128xf32>
    %2 = tpu.matmul %0, %1, %cst {dimension_numbers = #tpu.dot_dimension_numbers<[1], [0], [0], [1], [0, 0, 1, 1], [], []>} : vector<8x128xf32>, vector<128x128xf32>, vector<8x128xf32> -> vector<8x128xf32>
    %c0_3 = arith.constant 0 : index
    %c0_4 = arith.constant 0 : index
    %3 = vector.load %arg3[%c0_3, %c0_4] : memref<1x128xf32, #tpu.memory_space<vmem>>, vector<1x128xf32>
    %4 = vector.broadcast %3 : vector<1x128xf32> to vector<8x128xf32>
    %5 = arith.addf %2, %4 : vector<8x128xf32>
    %c0_5 = arith.constant 0 : index
    %c0_6 = arith.constant 0 : index
    %6 = vector.load %arg4[%c0_5, %c0_6] : memref<8x128xf32, #tpu.memory_space<vmem>>, vector<8x128xf32>
    tpu.vector_store %arg4[%c0_5, %c0_6], %5 {strides = array<i32>} : memref<8x128xf32, #tpu.memory_space<vmem>>, vector<8x128xf32>,
    return
  }
  func.func @transform_0(%arg0: i32) -> (i32, i32) {
    %c0_i32 = arith.constant 0 : i32
    %c0_i32_0 = arith.constant 0 : i32
    return %arg0, %c0_i32 : i32, i32
  }
  func.func @transform_1(%arg0: i32) -> (i32, i32) {
    %c0_i32 = arith.constant 0 : i32
    %c0_i32_0 = arith.constant 0 : i32
    %c0_i32_1 = arith.constant 0 : i32
    return %c0_i32, %c0_i32_0 : i32, i32
  }
  func.func @transform_2(%arg0: i32) -> (i32, i32) {
    %c0_i32 = arith.constant 0 : i32
    %c0_i32_0 = arith.constant 0 : i32
    %c0_i32_1 = arith.constant 0 : i32
    return %c0_i32, %c0_i32_0 : i32, i32
  }
  func.func @transform_3(%arg0: i32) -> (i32, i32) {
    %c0_i32 = arith.constant 0 : i32
    %c0_i32_0 = arith.constant 0 : i32
    return %arg0, %c0_i32 : i32, i32
  }
}

</mosaic_0001>

<llo_original>
// kernel: tpu_custom_call.1
$region0: #{tpu_custom_call.1}
  #allocation0 [shape = 'u32[]', space=smem, size = 0x4, offset = 0x4, fixed_abs, tag = 'smem constant byte address 0x4 - core index']
  #allocation1 [shape = 'u32[144,128]{1,0:T(1,128)}', space=vmem, size = 0x12000, scoped, tag = 'internal scratch']
  %s0 = inlined_call_operand.hbm [shape: f32[16,1024], index: 0, kind: input, shape index: {}]
  %s1 = inlined_call_operand.hbm [shape: f32[128,128], index: 1, kind: input, shape index: {}]
  %s2 = inlined_call_operand.vmem [shape: f32[1,128], index: 2, kind: input, shape index: {}]
  %s3 = inlined_call_operand.hbm [shape: f32[16,128], index: 3, kind: output, shape index: {}]
  %s4 = sld [smem:[#allocation0]]
  $region53: #{tpu_custom_call.1} parent=0
    _
  %s6 = ssub.s32 1, %s4
  %s7 = scalar_select 0, %s6, %s4
  $region1: #{tpu_custom_call.1} parent=0
    #allocation2 [shape = 'u8[8192]{0}', space=vmem, size = 0x2000, scoped, tag = 'input window, operand 0']
    #allocation3 [shape = 's32[2]{0}', space=sflag, size = 0x8, scoped, tag = 'scoped memory for tpu_custom_call.1']
    #allocation4 [shape = 's32[2]{0}', space=sflag, size = 0x8, scoped, tag = 'scoped memory for tpu_custom_call.1']
    #allocation5 [shape = 'u8[65536]{0}', space=vmem, size = 0x10000, scoped, tag = 'input window, operand 1, single buffered']
    #allocation6 [shape = 's32[1]{0}', space=sflag, size = 0x4, scoped, tag = 'scoped memory for tpu_custom_call.1']
    #allocation7 [shape = 'u8[8192]{0}', space=vmem, size = 0x2000, scoped, tag = 'output window, operand 0']
    %8 = vsyncpa [#allocation3], 0
    %s9 = scalar_lea.sflag [#allocation3], 1
    %10 = vsyncpa %s9, 0
    %11 = vsyncpa [#allocation6], 0
    %12 = vsyncpa [#allocation4], 0
    %s13 = scalar_lea.sflag [#allocation4], 1
    %14 = vsyncpa %s13, 0
    loop: start=0, step=1, limit=4
    $region2: #{tpu_custom_call.1} parent=1 // loop_pre_header
      _
    $region3: #{tpu_custom_call.1} parent=1 // loop_header
      %s16 = sphi 0, %s20
      %p17 = scmp.ge.s32.totalorder %s16, 4
      %s26 = sphi 0, %s28
      %s29 = sphi 0, %s26
      %s30 = sphi 0, %s29
      %s46 = sphi 0, %s30
      %s50 = sphi 0, %s50
      %s52 = sphi 0, %s50
      %s53 = sphi 0, %s52
      %s67 = sphi 0, %s53
      %s71 = sphi 0, %s71
      %s73 = sphi 0, %s71
      %s74 = sphi 0, %s73
      %s88 = sphi 0, %s74
      %s94 = sphi 0, %s96
      %s97 = sphi 0, %s94
      %s98 = sphi 0, %s97
      %s114 = sphi 0, %s98
    $region4: #{tpu_custom_call.1} parent=1 // loop_header_branch
      %19 = sbr.rel (%p17) target = $region8
    $region5: #{tpu_custom_call.1} parent=1 // loop_body
      %s21 = ssub.s32 %s16, 1
      %s22 = ssub.s32 %s16, 2
      %s23 = sadd.s32 %s16, 1
      %s24 = ssub.s32 %s16, %s23
      %p25 = scmp.eq.s32.totalorder %s24, 0
      %s27 = sadd.s32 %s26, 1
      %s28 = scalar_select %p25, %s26, %s27
      %p31 = pneg %p25
      %p32 = scmp.eq.s32.totalorder %s16, 1
      %p33 = por %p31, %p32
      %p34 = scmp.ne.s32.totalorder %s26, %s29
      %p35 = scmp.eq.s32.totalorder %s16, 0
      %p36 = por %p34, %p35
      %p37 = scmp.ne.s32.totalorder %s26, %s29
      %p38 = scmp.eq.s32.totalorder %s21, 1
      %p39 = por %p37, %p38
      %p40 = scmp.ne.s32.totalorder %s29, %s30
      %p41 = scmp.eq.s32.totalorder %s21, 0
      %p42 = por %p40, %p41
      %p43 = scmp.ne.s32.totalorder %s29, %s30
      %p44 = scmp.eq.s32.totalorder %s22, 1
      %p45 = por %p43, %p44
      %p47 = scmp.ne.s32.totalorder %s30, %s46
      %p48 = scmp.eq.s32.totalorder %s22, 0
      %p49 = por %p47, %p48
      %s51 = sadd.s32 %s50, 1
      %p54 = scmp.eq.s32.totalorder %s16, 1
      %p55 = scmp.ne.s32.totalorder %s50, %s52
      %p56 = scmp.eq.s32.totalorder %s16, 0
      %p57 = por %p55, %p56
      %p58 = scmp.ne.s32.totalorder %s50, %s52
      %p59 = scmp.eq.s32.totalorder %s21, 1
      %p60 = por %p58, %p59
      %p61 = scmp.ne.s32.totalorder %s52, %s53
      %p62 = scmp.eq.s32.totalorder %s21, 0
      %p63 = por %p61, %p62
      %p64 = scmp.ne.s32.totalorder %s52, %s53
      %p65 = scmp.eq.s32.totalorder %s22, 1
      %p66 = por %p64, %p65
      %p68 = scmp.ne.s32.totalorder %s53, %s67
      %p69 = scmp.eq.s32.totalorder %s22, 0
      %p70 = por %p68, %p69
      %s72 = sadd.s32 %s71, 1
      %p75 = scmp.eq.s32.totalorder %s16, 1
      %p76 = scmp.ne.s32.totalorder %s71, %s73
      %p77 = scmp.eq.s32.totalorder %s16, 0
      %p78 = por %p76, %p77
      %p79 = scmp.ne.s32.totalorder %s71, %s73
      %p80 = scmp.eq.s32.totalorder %s21, 1
      %p81 = por %p79, %p80
      %p82 = scmp.ne.s32.totalorder %s73, %s74
      %p83 = scmp.eq.s32.totalorder %s21, 0
      %p84 = por %p82, %p83
      %p85 = scmp.ne.s32.totalorder %s73, %s74
      %p86 = scmp.eq.s32.totalorder %s22, 1
      %p87 = por %p85, %p86
      %p89 = scmp.ne.s32.totalorder %s74, %s88
      %p90 = scmp.eq.s32.totalorder %s22, 0
      %p91 = por %p89, %p90
      %s92 = ssub.s32 %s16, %s23
      %p93 = scmp.eq.s32.totalorder %s92, 0
      %s95 = sadd.s32 %s94, 1
      %s96 = scalar_select %p93, %s94, %s95
      %p99 = pneg %p93
      %p100 = scmp.eq.s32.totalorder %s16, 1
      %p101 = por %p99, %p100
      %p102 = scmp.ne.s32.totalorder %s94, %s97
      %p103 = scmp.eq.s32.totalorder %s16, 0
      %p104 = por %p102, %p103
      %p105 = scmp.ne.s32.totalorder %s94, %s97
      %p106 = scmp.eq.s32.totalorder %s21, 1
      %p107 = por %p105, %p106
      %p108 = scmp.ne.s32.totalorder %s97, %s98
      %p109 = scmp.eq.s32.totalorder %s21, 0
      %p110 = por %p108, %p109
      %p111 = scmp.ne.s32.totalorder %s97, %s98
      %p112 = scmp.eq.s32.totalorder %s22, 1
      %p113 = por %p111, %p112
      %p115 = scmp.ne.s32.totalorder %s98, %s114
      %p116 = scmp.eq.s32.totalorder %s22, 0
      %p117 = por %p115, %p116
      %p118 = scmp.le.s32.totalorder 1, %s16
      %p119 = scmp.lt.s32.totalorder %s16, 3
      %p120 = pnand %p118, %p119
      %p121 = pneg %p120
      // Predicated region
      $region9: #{tpu_custom_call.1} parent=5 // pred_check
        _
      $region10: #{tpu_custom_call.1} parent=5 // pred_check_branch
        %123 = sbr.rel (%p120) target = $region12
      $region11: #{tpu_custom_call.1} parent=5 // pred_region
        %s124 = ssub.s32 %s16, 1
        // Predicated region
        $region13: #{tpu_custom_call.1} parent=11 // pred_check
          %p125 = pneg %p63
        $region14: #{tpu_custom_call.1} parent=11 // pred_check_branch
          %127 = sbr.rel (%p125) target = $region16
        $region15: #{tpu_custom_call.1} parent=11 // pred_region
          %s129 = ssub.s32 2048, 2048
          %130 = vsyncadd [#allocation6], %s129
          %s131 = sshll.u32 [#allocation5], 4
          %s132 = int_to_ptr.vmem [resolvable:$true] %s131
          %137 = dma.hbm_to_vmem [thread:$0]  %s1, 2048, %s132, [#allocation6], 128, 128, 8
        $region16: #{tpu_custom_call.1} parent=11 // pred_fallthru
          _
        // Predicated region
        $region17: #{tpu_custom_call.1} parent=11 // pred_check
          %p138 = pneg %p84
        $region18: #{tpu_custom_call.1} parent=11 // pred_check_branch
          %140 = sbr.rel (%p138) target = $region20
        $region19: #{tpu_custom_call.1} parent=11 // pred_region
          _
        $region20: #{tpu_custom_call.1} parent=11 // pred_fallthru
          _
      $region12: #{tpu_custom_call.1} parent=5 // pred_fallthru
        _
      %p141 = scmp.lt.s32.totalorder %s16, 2
      // Predicated region
      $region21: #{tpu_custom_call.1} parent=5 // pred_check
        %p142 = pneg %p141
      $region22: #{tpu_custom_call.1} parent=5 // pred_check_branch
        %144 = sbr.rel (%p142) target = $region24
      $region23: #{tpu_custom_call.1} parent=5 // pred_region
        // Predicated region
        $region25: #{tpu_custom_call.1} parent=23 // pred_check
          %p145 = pneg %p36
        $region26: #{tpu_custom_call.1} parent=23 // pred_check_branch
          %147 = sbr.rel (%p145) target = $region28
        $region27: #{tpu_custom_call.1} parent=23 // pred_region
          %s148 = sand.u32 %s26, 1
          %s149 = scalar_lea.sflag [#allocation3], %s148
          %s150 = sand.u32 %s26, 1
          %s151 = smul.addr %s150, 8
          %s152 = scalar_lea.vmem [#allocation2], %s151
          %s154 = ssub.s32 128, 128
          %155 = vsyncadd %s149, %s154
          %s156 = smul.addr %s16, 8
          %s157 = smul.addr %s156, 128
          %s158 = scalar_lea.hbm %s0, %s157
          %s160 = sshll.u32 %s152, 4
          %s161 = int_to_ptr.vmem [resolvable:$true] %s160
          %163 = dma.hbm_to_vmem [thread:$0]  %s158, 128, %s161, %s149
        $region28: #{tpu_custom_call.1} parent=23 // pred_fallthru
          _
      $region24: #{tpu_custom_call.1} parent=5 // pred_fallthru
        _
      %p164 = scmp.le.s32.totalorder 1, %s16
      %p165 = scmp.lt.s32.totalorder %s16, 3
      %p166 = pnand %p164, %p165
      %p167 = pneg %p166
      // Predicated region
      $region29: #{tpu_custom_call.1} parent=5 // pred_check
        _
      $region30: #{tpu_custom_call.1} parent=5 // pred_check_branch
        %169 = sbr.rel (%p166) target = $region32
      $region31: #{tpu_custom_call.1} parent=5 // pred_region
        %s170 = ssub.s32 %s16, 1
        %s171 = sand.u32 %s29, 1
        %s172 = scalar_lea.sflag [#allocation3], %s171
        %s173 = sand.u32 %s29, 1
        %s174 = smul.addr %s173, 8
        %s175 = scalar_lea.vmem [#allocation2], %s174
        // Predicated region
        $region33: #{tpu_custom_call.1} parent=31 // pred_check
          %p176 = pneg %p42
        $region34: #{tpu_custom_call.1} parent=31 // pred_check_branch
          %178 = sbr.rel (%p176) target = $region36
        $region35: #{tpu_custom_call.1} parent=31 // pred_region
          %179 = dma.done %s172, 128
        $region36: #{tpu_custom_call.1} parent=31 // pred_fallthru
          _
        // Predicated region
        $region37: #{tpu_custom_call.1} parent=31 // pred_check
          %p180 = pneg %p63
        $region38: #{tpu_custom_call.1} parent=31 // pred_check_branch
          %182 = sbr.rel (%p180) target = $region40
        $region39: #{tpu_custom_call.1} parent=31 // pred_region
          %183 = dma.done [#allocation6], 2048
        $region40: #{tpu_custom_call.1} parent=31 // pred_fallthru
          _
        %s184 = sand.u32 %s29, 1
        %s185 = scalar_lea.sflag [#allocation3], %s184
        %s186 = sand.u32 %s29, 1
        %s187 = smul.addr %s186, 8
        %s188 = scalar_lea.vmem [#allocation2], %s187
        %p189 = pneg %p42
        %p190 = pneg %p39
        %p191 = pneg %p63
        %p192 = pneg %p60
        %p193 = pneg %p84
        %p194 = pneg %p81
        %p195 = pneg %p110
        %p196 = pneg %p107
        %s197 = sand.u32 %s97, 1
        %s198 = scalar_lea.sflag [#allocation4], %s197
        %s199 = sand.u32 %s97, 1
        %s200 = smul.addr %s199, 8
        %s201 = scalar_lea.vmem [#allocation7], %s200
        %v202 = vld [vmem:[%s175] sm:$0xff]
        %v203 = vld [vmem:[#allocation5] sm:$0xff]
        %v204 = vld [vmem:[#allocation5 + $0x8] sm:$0xff]
        %v205 = vld [vmem:[#allocation5 + $0x10] sm:$0xff]
        %v206 = vld [vmem:[#allocation5 + $0x18] sm:$0xff]
        %v207 = vld [vmem:[#allocation5 + $0x20] sm:$0xff]
        %v208 = vld [vmem:[#allocation5 + $0x28] sm:$0xff]
        %v209 = vld [vmem:[#allocation5 + $0x30] sm:$0xff]
        %v210 = vld [vmem:[#allocation5 + $0x38] sm:$0xff]
        %v211 = vld [vmem:[#allocation5 + $0x40] sm:$0xff]
        %v212 = vld [vmem:[#allocation5 + $0x48] sm:$0xff]
        %v213 = vld [vmem:[#allocation5 + $0x50] sm:$0xff]
        %v214 = vld [vmem:[#allocation5 + $0x58] sm:$0xff]
        %v215 = vld [vmem:[#allocation5 + $0x60] sm:$0xff]
        %v216 = vld [vmem:[#allocation5 + $0x68] sm:$0xff]
        %v217 = vld [vmem:[#allocation5 + $0x70] sm:$0xff]
        %v218 = vld [vmem:[#allocation5 + $0x78] sm:$0xff]
        %v219 = vld [vmem:[%s2] sm:$0x1]
        %v221 = vlaneseq
        %v222 = vshrl.u32 %v221, 7
        %v223 = vsub.s32 0, %v222
        %v224 = vrot.slane %v219, %v223
        %226 = vmatprep.subr.mxu0 0.0
        %227 = vmatpush1.msra.mxu0 %v203
        %228 = vmatprep.subr.mxu0 0.0
        %229 = vmatpush1.msra.mxu0 %v204
        %230 = vmatprep.subr.mxu0 0.0
        %231 = vmatpush1.msra.mxu0 %v205
        %232 = vmatprep.subr.mxu0 0.0
        %233 = vmatpush1.msra.mxu0 %v206
        %234 = vmatprep.subr.mxu0 0.0
        %235 = vmatpush1.msra.mxu0 %v207
        %236 = vmatprep.subr.mxu0 0.0
        %237 = vmatpush1.msra.mxu0 %v208
        %238 = vmatprep.subr.mxu0 0.0
        %239 = vmatpush1.msra.mxu0 %v209
        %240 = vmatprep.subr.mxu0 0.0
        %241 = vmatpush1.msra.mxu0 %v210
        %242 = vmatprep.subr.mxu0 0.0
        %243 = vmatpush1.msra.mxu0 %v211
        %244 = vmatprep.subr.mxu0 0.0
        %245 = vmatpush1.msra.mxu0 %v212
        %246 = vmatprep.subr.mxu0 0.0
        %247 = vmatpush1.msra.mxu0 %v213
        %248 = vmatprep.subr.mxu0 0.0
        %249 = vmatpush1.msra.mxu0 %v214
        %250 = vmatprep.subr.mxu0 0.0
        %251 = vmatpush1.msra.mxu0 %v215
        %252 = vmatprep.subr.mxu0 0.0
        %253 = vmatpush1.msra.mxu0 %v216
        %254 = vmatprep.subr.mxu0 0.0
        %255 = vmatpush1.msra.mxu0 %v217
        %256 = vmatprep.subr.mxu0 0.0
        %257 = vmatpush1.msra.mxu0 %v218
        %258 = vmatprep.subr.mxu0 0.0
        %259 = vmatpush1.msra.mxu0 0.0
        %260 = vmatprep.subr.mxu0 0.0
        %261 = vmatpush1.msra.mxu0 0.0
        %262 = vmatprep.subr.mxu0 0.0
        %263 = vmatpush1.msra.mxu0 0.0
        %264 = vmatprep.subr.mxu0 0.0
        %265 = vmatpush1.msra.mxu0 0.0
        %266 = vmatprep.subr.mxu0 0.0
        %267 = vmatpush1.msra.mxu0 0.0
        %268 = vmatprep.subr.mxu0 0.0
        %269 = vmatpush1.msra.mxu0 0.0
        %270 = vmatprep.subr.mxu0 0.0
        %271 = vmatpush1.msra.mxu0 0.0
        %272 = vmatprep.subr.mxu0 0.0
        %273 = vmatpush1.msra.mxu0 0.0
        %274 = vmatprep.subr.mxu0 0.0
        %275 = vmatpush1.msra.mxu0 0.0
        %276 = vmatprep.subr.mxu0 0.0
        %277 = vmatpush1.msra.mxu0 0.0
        %278 = vmatprep.subr.mxu0 0.0
        %279 = vmatpush1.msra.mxu0 0.0
        %280 = vmatprep.subr.mxu0 0.0
        %281 = vmatpush1.msra.mxu0 0.0
        %282 = vmatprep.subr.mxu0 0.0
        %283 = vmatpush1.msra.mxu0 0.0
        %284 = vmatprep.subr.mxu0 0.0
        %285 = vmatpush1.msra.mxu0 0.0
        %286 = vmatprep.subr.mxu0 0.0
        %287 = vmatpush1.msra.mxu0 0.0
        %288 = vmatprep.subr.mxu0 0.0
        %289 = vmatpush1.msra.mxu0 0.0
        %290 = vmatprep.mubr.f32.mxu0 0.0
        %291 = vmatmul.mubr.f32.gmra.mrb[0].mxu0 %v202
        %v292 = vpop.f32.mrb[0].mxu0
        %v293 = vadd.f32 %v224, %v292
        %v294 = vpop.f32.mrb[0].mxu0
        %295 = vdwg.mxu0
        %296 = vst [vmem:[%s201] sm:$0xff] %v293
        %s297 = sand.u32 %s97, 1
        %s298 = scalar_lea.sflag [#allocation4], %s297
        %s299 = sand.u32 %s97, 1
        %s300 = smul.addr %s299, 8
        %s301 = scalar_lea.vmem [#allocation7], %s300
        // Predicated region
        $region41: #{tpu_custom_call.1} parent=31 // pred_check
          %p302 = pneg %p107
        $region42: #{tpu_custom_call.1} parent=31 // pred_check_branch
          %304 = sbr.rel (%p302) target = $region44
        $region43: #{tpu_custom_call.1} parent=31 // pred_region
          %s306 = ssub.s32 128, 128
          %307 = vsyncadd %s298, %s306
          %s308 = smul.addr %s21, 128
          %s309 = scalar_lea.hbm %s3, %s308
          %s311 = sshll.u32 %s301, 4
          %s312 = int_to_ptr.vmem [resolvable:$true] %s311
          %314 = dma.vmem_to_hbm [thread:$0]  %s312, 128, %s309, %s298
        $region44: #{tpu_custom_call.1} parent=31 // pred_fallthru
          _
      $region32: #{tpu_custom_call.1} parent=5 // pred_fallthru
        _
      %p315 = scmp.le.s32.totalorder 2, %s16
      // Predicated region
      $region45: #{tpu_custom_call.1} parent=5 // pred_check
        %p316 = pneg %p315
      $region46: #{tpu_custom_call.1} parent=5 // pred_check_branch
        %318 = sbr.rel (%p316) target = $region48
      $region47: #{tpu_custom_call.1} parent=5 // pred_region
        %s319 = ssub.s32 %s16, 2
        // Predicated region
        $region49: #{tpu_custom_call.1} parent=47 // pred_check
          %p320 = pneg %p113
        $region50: #{tpu_custom_call.1} parent=47 // pred_check_branch
          %322 = sbr.rel (%p320) target = $region52
        $region51: #{tpu_custom_call.1} parent=47 // pred_region
          %s323 = sand.u32 %s98, 1
          %s324 = scalar_lea.sflag [#allocation4], %s323
          %s325 = sand.u32 %s98, 1
          %s326 = smul.addr %s325, 8
          %s327 = scalar_lea.vmem [#allocation7], %s326
          %328 = dma.done %s324, 128
        $region52: #{tpu_custom_call.1} parent=47 // pred_fallthru
          _
      $region48: #{tpu_custom_call.1} parent=5 // pred_fallthru
        _
    $region6: #{tpu_custom_call.1} parent=1 // loop_footer
      %s20 = sadd.s32 1, %s16
    $region7: #{tpu_custom_call.1} parent=1 // loop_footer_branch
      %15 = sbr.rel target = $region3
    $region8: #{tpu_custom_call.1} parent=1 // loop_exit
      _
    %329 = vsyncpa [#allocation3], 1
    %s330 = scalar_lea.sflag [#allocation3], 1
    %331 = vsyncpa %s330, 1
    %332 = vsyncpa [#allocation6], 1
    %333 = vsyncpa [#allocation4], 1
    %s334 = scalar_lea.sflag [#allocation4], 1
    %335 = vsyncpa %s334, 1

// kernel: tpu_custom_call.1
$region0: #{tpu_custom_call.1}
  #allocation0 [shape = 'u32[]', space=smem, size = 0x4, offset = 0x4, fixed_abs, tag = 'smem constant byte address 0x4 - core index']
  #allocation1 [shape = 'u32[144,128]{1,0:T(1,128)}', space=vmem, size = 0x12000, scoped, tag = 'internal scratch']
  %s0 = inlined_call_operand.hbm [shape: f32[16,1024], index: 0, kind: input, shape index: {}]
  %s1 = inlined_call_operand.hbm [shape: f32[128,128], index: 1, kind: input, shape index: {}]
  %s2 = inlined_call_operand.vmem [shape: f32[1,128], index: 2, kind: input, shape index: {}]
  %s3 = inlined_call_operand.hbm [shape: f32[16,128], index: 3, kind: output, shape index: {}]
  %s4 = sld [smem:[#allocation0]]
  $region53: #{tpu_custom_call.1} parent=0
    _
  %s6 = ssub.s32 1, %s4
  %s7 = scalar_select 0, %s6, %s4
  $region1: #{tpu_custom_call.1} parent=0
    #allocation2 [shape = 'u8[8192]{0}', space=vmem, size = 0x2000, scoped, tag = 'input window, operand 0']
    #allocation3 [shape = 's32[2]{0}', space=sflag, size = 0x8, scoped, tag = 'scoped memory for tpu_custom_call.1']
    #allocation4 [shape = 's32[2]{0}', space=sflag, size = 0x8, scoped, tag = 'scoped memory for tpu_custom_call.1']
    #allocation5 [shape = 'u8[65536]{0}', space=vmem, size = 0x10000, scoped, tag = 'input window, operand 1, single buffered']
    #allocation6 [shape = 's32[1]{0}', space=sflag, size = 0x4, scoped, tag = 'scoped memory for tpu_custom_call.1']
    #allocation7 [shape = 'u8[8192]{0}', space=vmem, size = 0x2000, scoped, tag = 'output window, operand 0']
    %8 = vsyncpa [#allocation3], 0
    %s9 = scalar_lea.sflag [#allocation3], 1
    %10 = vsyncpa %s9, 0
    %11 = vsyncpa [#allocation6], 0
    %12 = vsyncpa [#allocation4], 0
    %s13 = scalar_lea.sflag [#allocation4], 1
    %14 = vsyncpa %s13, 0
    loop: start=0, step=1, limit=4
    $region2: #{tpu_custom_call.1} parent=1 // loop_pre_header
      _
    $region3: #{tpu_custom_call.1} parent=1 // loop_header
      %s16 = sphi 0, %s20
      %p17 = scmp.ge.s32.totalorder %s16, 4
      %s26 = sphi 0, %s28
      %s29 = sphi 0, %s26
      %s30 = sphi 0, %s29
      %s46 = sphi 0, %s30
      %s50 = sphi 0, %s50
      %s52 = sphi 0, %s50
      %s53 = sphi 0, %s52
      %s67 = sphi 0, %s53
      %s71 = sphi 0, %s71
      %s73 = sphi 0, %s71
      %s74 = sphi 0, %s73
      %s88 = sphi 0, %s74
      %s94 = sphi 0, %s96
      %s97 = sphi 0, %s94
      %s98 = sphi 0, %s97
      %s114 = sphi 0, %s98
    $region4: #{tpu_custom_call.1} parent=1 // loop_header_branch
      %19 = sbr.rel (%p17) target = $region8
    $region5: #{tpu_custom_call.1} parent=1 // loop_body
      %s21 = ssub.s32 %s16, 1
      %s22 = ssub.s32 %s16, 2
      %s23 = sadd.s32 %s16, 1
      %s24 = ssub.s32 %s16, %s23
      %p25 = scmp.eq.s32.totalorder %s24, 0
      %s27 = sadd.s32 %s26, 1
      %s28 = scalar_select %p25, %s26, %s27
      %p31 = pneg %p25
      %p32 = scmp.eq.s32.totalorder %s16, 1
      %p33 = por %p31, %p32
      %p34 = scmp.ne.s32.totalorder %s26, %s29
      %p35 = scmp.eq.s32.totalorder %s16, 0
      %p36 = por %p34, %p35
      %p37 = scmp.ne.s32.totalorder %s26, %s29
      %p38 = scmp.eq.s32.totalorder %s21, 1
      %p39 = por %p37, %p38
      %p40 = scmp.ne.s32.totalorder %s29, %s30
      %p41 = scmp.eq.s32.totalorder %s21, 0
      %p42 = por %p40, %p41
      %p43 = scmp.ne.s32.totalorder %s29, %s30
      %p44 = scmp.eq.s32.totalorder %s22, 1
      %p45 = por %p43, %p44
      %p47 = scmp.ne.s32.totalorder %s30, %s46
      %p48 = scmp.eq.s32.totalorder %s22, 0
      %p49 = por %p47, %p48
      %s51 = sadd.s32 %s50, 1
      %p54 = scmp.eq.s32.totalorder %s16, 1
      %p55 = scmp.ne.s32.totalorder %s50, %s52
      %p56 = scmp.eq.s32.totalorder %s16, 0
      %p57 = por %p55, %p56
      %p58 = scmp.ne.s32.totalorder %s50, %s52
      %p59 = scmp.eq.s32.totalorder %s21, 1
      %p60 = por %p58, %p59
      %p61 = scmp.ne.s32.totalorder %s52, %s53
      %p62 = scmp.eq.s32.totalorder %s21, 0
      %p63 = por %p61, %p62
      %p64 = scmp.ne.s32.totalorder %s52, %s53
      %p65 = scmp.eq.s32.totalorder %s22, 1
      %p66 = por %p64, %p65
      %p68 = scmp.ne.s32.totalorder %s53, %s67
      %p69 = scmp.eq.s32.totalorder %s22, 0
      %p70 = por %p68, %p69
      %s72 = sadd.s32 %s71, 1
      %p75 = scmp.eq.s32.totalorder %s16, 1
      %p76 = scmp.ne.s32.totalorder %s71, %s73
      %p77 = scmp.eq.s32.totalorder %s16, 0
      %p78 = por %p76, %p77
      %p79 = scmp.ne.s32.totalorder %s71, %s73
      %p80 = scmp.eq.s32.totalorder %s21, 1
      %p81 = por %p79, %p80
      %p82 = scmp.ne.s32.totalorder %s73, %s74
      %p83 = scmp.eq.s32.totalorder %s21, 0
      %p84 = por %p82, %p83
      %p85 = scmp.ne.s32.totalorder %s73, %s74
      %p86 = scmp.eq.s32.totalorder %s22, 1
      %p87 = por %p85, %p86
      %p89 = scmp.ne.s32.totalorder %s74, %s88
      %p90 = scmp.eq.s32.totalorder %s22, 0
      %p91 = por %p89, %p90
      %s92 = ssub.s32 %s16, %s23
      %p93 = scmp.eq.s32.totalorder %s92, 0
      %s95 = sadd.s32 %s94, 1
      %s96 = scalar_select %p93, %s94, %s95
      %p99 = pneg %p93
      %p100 = scmp.eq.s32.totalorder %s16, 1
      %p101 = por %p99, %p100
      %p102 = scmp.ne.s32.totalorder %s94, %s97
      %p103 = scmp.eq.s32.totalorder %s16, 0
      %p104 = por %p102, %p103
      %p105 = scmp.ne.s32.totalorder %s94, %s97
      %p106 = scmp.eq.s32.totalorder %s21, 1
      %p107 = por %p105, %p106
      %p108 = scmp.ne.s32.totalorder %s97, %s98
      %p109 = scmp.eq.s32.totalorder %s21, 0
      %p110 = por %p108, %p109
      %p111 = scmp.ne.s32.totalorder %s97, %s98
      %p112 = scmp.eq.s32.totalorder %s22, 1
      %p113 = por %p111, %p112
      %p115 = scmp.ne.s32.totalorder %s98, %s114
      %p116 = scmp.eq.s32.totalorder %s22, 0
      %p117 = por %p115, %p116
      %p118 = scmp.le.s32.totalorder 1, %s16
      %p119 = scmp.lt.s32.totalorder %s16, 3
      %p120 = pnand %p118, %p119
      %p121 = pneg %p120
      // Predicated region
      $region9: #{tpu_custom_call.1} parent=5 // pred_check
        _
      $region10: #{tpu_custom_call.1} parent=5 // pred_check_branch
        %123 = sbr.rel (%p120) target = $region12
      $region11: #{tpu_custom_call.1} parent=5 // pred_region
        %s124 = ssub.s32 %s16, 1
        // Predicated region
        $region13: #{tpu_custom_call.1} parent=11 // pred_check
          %p125 = pneg %p63
        $region14: #{tpu_custom_call.1} parent=11 // pred_check_branch
          %127 = sbr.rel (%p125) target = $region16
        $region15: #{tpu_custom_call.1} parent=11 // pred_region
          %s129 = ssub.s32 2048, 2048
          %130 = vsyncadd [#allocation6], %s129
          %s131 = sshll.u32 [#allocation5], 4
          %s132 = int_to_ptr.vmem [resolvable:$true] %s131
          %137 = dma.hbm_to_vmem [thread:$0]  %s1, 2048, %s132, [#allocation6], 128, 128, 8
        $region16: #{tpu_custom_call.1} parent=11 // pred_fallthru
          _
        // Predicated region
        $region17: #{tpu_custom_call.1} parent=11 // pred_check
          %p138 = pneg %p84
        $region18: #{tpu_custom_call.1} parent=11 // pred_check_branch
          %140 = sbr.rel (%p138) target = $region20
        $region19: #{tpu_custom_call.1} parent=11 // pred_region
          _
        $region20: #{tpu_custom_call.1} parent=11 // pred_fallthru
          _
      $region12: #{tpu_custom_call.1} parent=5 // pred_fallthru
        _
      %p141 = scmp.lt.s32.totalorder %s16, 2
      // Predicated region
      $region21: #{tpu_custom_call.1} parent=5 // pred_check
        %p142 = pneg %p141
      $region22: #{tpu_custom_call.1} parent=5 // pred_check_branch
        %144 = sbr.rel (%p142) target = $region24
      $region23: #{tpu_custom_call.1} parent=5 // pred_region
        // Predicated region
        $region25: #{tpu_custom_call.1} parent=23 // pred_check
          %p145 = pneg %p36
        $region26: #{tpu_custom_call.1} parent=23 // pred_check_branch
          %147 = sbr.rel (%p145) target = $region28
        $region27: #{tpu_custom_call.1} parent=23 // pred_region
          %s148 = sand.u32 %s26, 1
          %s149 = scalar_lea.sflag [#allocation3], %s148
          %s150 = sand.u32 %s26, 1
          %s151 = smul.addr %s150, 8
          %s152 = scalar_lea.vmem [#allocation2], %s151
          %s154 = ssub.s32 128, 128
          %155 = vsyncadd %s149, %s154
          %s156 = smul.addr %s16, 8
          %s157 = smul.addr %s156, 128
          %s158 = scalar_lea.hbm %s0, %s157
          %s160 = sshll.u32 %s152, 4
          %s161 = int_to_ptr.vmem [resolvable:$true] %s160
          %163 = dma.hbm_to_vmem [thread:$0]  %s158, 128, %s161, %s149
        $region28: #{tpu_custom_call.1} parent=23 // pred_fallthru
          _
      $region24: #{tpu_custom_call.1} parent=5 // pred_fallthru
        _
      %p164 = scmp.le.s32.totalorder 1, %s16
      %p165 = scmp.lt.s32.totalorder %s16, 3
      %p166 = pnand %p164, %p165
      %p167 = pneg %p166
      // Predicated region
      $region29: #{tpu_custom_call.1} parent=5 // pred_check
        _
      $region30: #{tpu_custom_call.1} parent=5 // pred_check_branch
        %169 = sbr.rel (%p166) target = $region32
      $region31: #{tpu_custom_call.1} parent=5 // pred_region
        %s170 = ssub.s32 %s16, 1
        %s171 = sand.u32 %s29, 1
        %s172 = scalar_lea.sflag [#allocation3], %s171
        %s173 = sand.u32 %s29, 1
        %s174 = smul.addr %s173, 8
        %s175 = scalar_lea.vmem [#allocation2], %s174
        // Predicated region
        $region33: #{tpu_custom_call.1} parent=31 // pred_check
          %p176 = pneg %p42
        $region34: #{tpu_custom_call.1} parent=31 // pred_check_branch
          %178 = sbr.rel (%p176) target = $region36
        $region35: #{tpu_custom_call.1} parent=31 // pred_region
          %179 = dma.done %s172, 128
        $region36: #{tpu_custom_call.1} parent=31 // pred_fallthru
          _
        // Predicated region
        $region37: #{tpu_custom_call.1} parent=31 // pred_check
          %p180 = pneg %p63
        $region38: #{tpu_custom_call.1} parent=31 // pred_check_branch
          %182 = sbr.rel (%p180) target = $region40
        $region39: #{tpu_custom_call.1} parent=31 // pred_region
          %183 = dma.done [#allocation6], 2048
        $region40: #{tpu_custom_call.1} parent=31 // pred_fallthru
          _
        %s184 = sand.u32 %s29, 1
        %s185 = scalar_lea.sflag [#allocation3], %s184
        %s186 = sand.u32 %s29, 1
        %s187 = smul.addr %s186, 8
        %s188 = scalar_lea.vmem [#allocation2], %s187
        %p189 = pneg %p42
        %p190 = pneg %p39
        %p191 = pneg %p63
        %p192 = pneg %p60
        %p193 = pneg %p84
        %p194 = pneg %p81
        %p195 = pneg %p110
        %p196 = pneg %p107
        %s197 = sand.u32 %s97, 1
        %s198 = scalar_lea.sflag [#allocation4], %s197
        %s199 = sand.u32 %s97, 1
        %s200 = smul.addr %s199, 8
        %s201 = scalar_lea.vmem [#allocation7], %s200
        %v202 = vld [vmem:[%s175] sm:$0xff]
        %v203 = vld [vmem:[#allocation5] sm:$0xff]
        %v204 = vld [vmem:[#allocation5 + $0x8] sm:$0xff]
        %v205 = vld [vmem:[#allocation5 + $0x10] sm:$0xff]
        %v206 = vld [vmem:[#allocation5 + $0x18] sm:$0xff]
        %v207 = vld [vmem:[#allocation5 + $0x20] sm:$0xff]
        %v208 = vld [vmem:[#allocation5 + $0x28] sm:$0xff]
        %v209 = vld [vmem:[#allocation5 + $0x30] sm:$0xff]
        %v210 = vld [vmem:[#allocation5 + $0x38] sm:$0xff]
        %v211 = vld [vmem:[#allocation5 + $0x40] sm:$0xff]
        %v212 = vld [vmem:[#allocation5 + $0x48] sm:$0xff]
        %v213 = vld [vmem:[#allocation5 + $0x50] sm:$0xff]
        %v214 = vld [vmem:[#allocation5 + $0x58] sm:$0xff]
        %v215 = vld [vmem:[#allocation5 + $0x60] sm:$0xff]
        %v216 = vld [vmem:[#allocation5 + $0x68] sm:$0xff]
        %v217 = vld [vmem:[#allocation5 + $0x70] sm:$0xff]
        %v218 = vld [vmem:[#allocation5 + $0x78] sm:$0xff]
        %v219 = vld [vmem:[%s2] sm:$0x1]
        %v221 = vlaneseq
        %v222 = vshrl.u32 %v221, 7
        %v223 = vsub.s32 0, %v222
        %v224 = vrot.slane %v219, %v223
        %226 = vmatprep.subr.mxu0 0.0
        %227 = vmatpush1.msra.mxu0 %v203
        %228 = vmatprep.subr.mxu0 0.0
        %229 = vmatpush1.msra.mxu0 %v204
        %230 = vmatprep.subr.mxu0 0.0
        %231 = vmatpush1.msra.mxu0 %v205
        %232 = vmatprep.subr.mxu0 0.0
        %233 = vmatpush1.msra.mxu0 %v206
        %234 = vmatprep.subr.mxu0 0.0
        %235 = vmatpush1.msra.mxu0 %v207
        %236 = vmatprep.subr.mxu0 0.0
        %237 = vmatpush1.msra.mxu0 %v208
        %238 = vmatprep.subr.mxu0 0.0
        %239 = vmatpush1.msra.mxu0 %v209
        %240 = vmatprep.subr.mxu0 0.0
        %241 = vmatpush1.msra.mxu0 %v210
        %242 = vmatprep.subr.mxu0 0.0
        %243 = vmatpush1.msra.mxu0 %v211
        %244 = vmatprep.subr.mxu0 0.0
        %245 = vmatpush1.msra.mxu0 %v212
        %246 = vmatprep.subr.mxu0 0.0
        %247 = vmatpush1.msra.mxu0 %v213
        %248 = vmatprep.subr.mxu0 0.0
        %249 = vmatpush1.msra.mxu0 %v214
        %250 = vmatprep.subr.mxu0 0.0
        %251 = vmatpush1.msra.mxu0 %v215
        %252 = vmatprep.subr.mxu0 0.0
        %253 = vmatpush1.msra.mxu0 %v216
        %254 = vmatprep.subr.mxu0 0.0
        %255 = vmatpush1.msra.mxu0 %v217
        %256 = vmatprep.subr.mxu0 0.0
        %257 = vmatpush1.msra.mxu0 %v218
        %258 = vmatprep.subr.mxu0 0.0
        %259 = vmatpush1.msra.mxu0 0.0
        %260 = vmatprep.subr.mxu0 0.0
        %261 = vmatpush1.msra.mxu0 0.0
        %262 = vmatprep.subr.mxu0 0.0
        %263 = vmatpush1.msra.mxu0 0.0
        %264 = vmatprep.subr.mxu0 0.0
        %265 = vmatpush1.msra.mxu0 0.0
        %266 = vmatprep.subr.mxu0 0.0
        %267 = vmatpush1.msra.mxu0 0.0
        %268 = vmatprep.subr.mxu0 0.0
        %269 = vmatpush1.msra.mxu0 0.0
        %270 = vmatprep.subr.mxu0 0.0
        %271 = vmatpush1.msra.mxu0 0.0
        %272 = vmatprep.subr.mxu0 0.0
        %273 = vmatpush1.msra.mxu0 0.0
        %274 = vmatprep.subr.mxu0 0.0
        %275 = vmatpush1.msra.mxu0 0.0
        %276 = vmatprep.subr.mxu0 0.0
        %277 = vmatpush1.msra.mxu0 0.0
        %278 = vmatprep.subr.mxu0 0.0
        %279 = vmatpush1.msra.mxu0 0.0
        %280 = vmatprep.subr.mxu0 0.0
        %281 = vmatpush1.msra.mxu0 0.0
        %282 = vmatprep.subr.mxu0 0.0
        %283 = vmatpush1.msra.mxu0 0.0
        %284 = vmatprep.subr.mxu0 0.0
        %285 = vmatpush1.msra.mxu0 0.0
        %286 = vmatprep.subr.mxu0 0.0
        %287 = vmatpush1.msra.mxu0 0.0
        %288 = vmatprep.subr.mxu0 0.0
        %289 = vmatpush1.msra.mxu0 0.0
        %290 = vmatprep.mubr.f32.mxu0 0.0
        %291 = vmatmul.mubr.f32.gmra.mrb[0].mxu0 %v202
        %v292 = vpop.f32.mrb[0].mxu0
        %v293 = vadd.f32 %v224, %v292
        %v294 = vpop.f32.mrb[0].mxu0
        %295 = vdwg.mxu0
        %296 = vst [vmem:[%s201] sm:$0xff] %v293
        %s297 = sand.u32 %s97, 1
        %s298 = scalar_lea.sflag [#allocation4], %s297
        %s299 = sand.u32 %s97, 1
        %s300 = smul.addr %s299, 8
        %s301 = scalar_lea.vmem [#allocation7], %s300
        // Predicated region
        $region41: #{tpu_custom_call.1} parent=31 // pred_check
          %p302 = pneg %p107
        $region42: #{tpu_custom_call.1} parent=31 // pred_check_branch
          %304 = sbr.rel (%p302) target = $region44
        $region43: #{tpu_custom_call.1} parent=31 // pred_region
          %s306 = ssub.s32 128, 128
          %307 = vsyncadd %s298, %s306
          %s308 = smul.addr %s21, 128
          %s309 = scalar_lea.hbm %s3, %s308
          %s311 = sshll.u32 %s301, 4
          %s312 = int_to_ptr.vmem [resolvable:$true] %s311
          %314 = dma.vmem_to_hbm [thread:$0]  %s312, 128, %s309, %s298
        $region44: #{tpu_custom_call.1} parent=31 // pred_fallthru
          _
      $region32: #{tpu_custom_call.1} parent=5 // pred_fallthru
        _
      %p315 = scmp.le.s32.totalorder 2, %s16
      // Predicated region
      $region45: #{tpu_custom_call.1} parent=5 // pred_check
        %p316 = pneg %p315
      $region46: #{tpu_custom_call.1} parent=5 // pred_check_branch
        %318 = sbr.rel (%p316) target = $region48
      $region47: #{tpu_custom_call.1} parent=5 // pred_region
        %s319 = ssub.s32 %s16, 2
        // Predicated region
        $region49: #{tpu_custom_call.1} parent=47 // pred_check
          %p320 = pneg %p113
        $region50: #{tpu_custom_call.1} parent=47 // pred_check_branch
          %322 = sbr.rel (%p320) target = $region52
        $region51: #{tpu_custom_call.1} parent=47 // pred_region
          %s323 = sand.u32 %s98, 1
          %s324 = scalar_lea.sflag [#allocation4], %s323
          %s325 = sand.u32 %s98, 1
          %s326 = smul.addr %s325, 8
          %s327 = scalar_lea.vmem [#allocation7], %s326
          %328 = dma.done %s324, 128
        $region52: #{tpu_custom_call.1} parent=47 // pred_fallthru
          _
      $region48: #{tpu_custom_call.1} parent=5 // pred_fallthru
        _
    $region6: #{tpu_custom_call.1} parent=1 // loop_footer
      %s20 = sadd.s32 1, %s16
    $region7: #{tpu_custom_call.1} parent=1 // loop_footer_branch
      %15 = sbr.rel target = $region3
    $region8: #{tpu_custom_call.1} parent=1 // loop_exit
      _
    %329 = vsyncpa [#allocation3], 1
    %s330 = scalar_lea.sflag [#allocation3], 1
    %331 = vsyncpa %s330, 1
    %332 = vsyncpa [#allocation6], 1
    %333 = vsyncpa [#allocation4], 1
    %s334 = scalar_lea.sflag [#allocation4], 1
    %335 = vsyncpa %s334, 1

</llo_original>
